<compile_context>
chip_gen: v7x
topology: tpu7x:2x2x1
jax: 0.10.0
libtpu: 0.0.40
codegen_flags: <defaults>
</compile_context>

<pallas_src>
import jax
import jax.numpy as jnp
from jax.experimental import pallas as pl
from jax.experimental.pallas import tpu as pltpu

NEG_SLOPE = 0.01  # F.leaky_relu default negative_slope
LANE = 128        # f32 lane width
SUBLANE = 8       # f32 sublane count


def _round_up(n, m):
    return ((n + m - 1) // m) * m


def _cdiv(a, b):
    return -(-a // b)


def _is_v7x():
    try:
        kind = jax.devices()[0].device_kind.lower()
        return ("v7" in kind) or ("tpu7" in kind)
    except Exception:
        return False


def _leaky_relu(x):
    # For slope in (0,1), max(x, s*x) == where(x>0, x, s*x): one VPU op.
    return jnp.maximum(x, NEG_SLOPE * x)


def qnetwork_kernel(x_ref, w1_ref, b1_ref, w2_ref, b2_ref, w3_ref, b3_ref, o_ref):
    # fc_1 + leaky_relu  (x keeps its real, un-padded feature width)
    h = jnp.dot(x_ref[...], w1_ref[...], preferred_element_type=jnp.float32)
    h = _leaky_relu(h + b1_ref[...].astype(jnp.float32))

    # fc_2 + leaky_relu
    h = jnp.dot(h.astype(w2_ref.dtype), w2_ref[...], preferred_element_type=jnp.float32)
    h = _leaky_relu(h + b2_ref[...].astype(jnp.float32))

    # fc_out (no activation)
    q = jnp.dot(h.astype(w3_ref.dtype), w3_ref[...], preferred_element_type=jnp.float32)
    q = q + b3_ref[...].astype(jnp.float32)

    o_ref[...] = q.astype(o_ref.dtype)


def qnetwork_forward(x, params, *, block_b=2048, trim_output=True):
    """x: (B, state_dim); params: dict of w1,b1,w2,b2,w3,b3 in (in, out) layout.

    trim_output=False returns the (Bp, Ap) lane-dense padded output (padded rows
    and padded action lanes are exactly 0) and skips the extra HBM slice pass.
    """
    w1, b1 = params["w1"], params["b1"]
    w2, b2 = params["w2"], params["b2"]
    w3, b3 = params["w3"], params["b3"]

    B, S = x.shape
    L = w1.shape[1]
    A = w3.shape[1]

    # Lane-pad only the latent / action dims (MXU output tiles + unmasked stores).
    Lp = _round_up(L, LANE)
    Ap = _round_up(A, LANE)

    # Balanced batch tiling.
    B_eff = max(B, 1)
    n_tiles = _cdiv(B_eff, block_b)
    # v7x has 2 TensorCores; "parallel" only uses both with >= 2 grid steps.
    if n_tiles == 1 and B_eff >= 16 and _is_v7x():
        n_tiles = 2
    TB = _round_up(_cdiv(B_eff, n_tiles), SUBLANE)

    # VMEM cap: double-buffered x/out tiles + two live (TB, Lp) f32 activation
    # temps + double-buffered weights.  ~12 MiB keeps v5e (16 MiB scoped default)
    # safe; v6e/v7x have far more headroom.
    weight_bytes_db = 2 * 4 * (S * Lp + Lp + Lp * Lp + Lp + Lp * Ap + Ap)
    per_row_bytes = 4 * (2 * (S + Ap) + 2 * Lp)
    vmem_budget = 12 * 1024 * 1024
    max_tb = max(SUBLANE, ((vmem_budget - weight_bytes_db) // per_row_bytes)
                 // SUBLANE * SUBLANE)
    TB = min(TB, max_tb)
    Bp = _round_up(B_eff, TB)

    def pad2(a, r, c):
        pr, pc = r - a.shape[0], c - a.shape[1]
        return a if (pr == 0 and pc == 0) else jnp.pad(a, ((0, pr), (0, pc)))

    xp = pad2(x, Bp, S)                      # batch-pad only (often a no-op)
    w1p, b1p = pad2(w1, S, Lp), pad2(b1, 1, Lp)
    w2p, b2p = pad2(w2, Lp, Lp), pad2(b2, 1, Lp)
    w3p, b3p = pad2(w3, Lp, Ap), pad2(b3, 1, Ap)

    const2 = lambda i: (0, 0)  # weights/biases: same block every step (VMEM-resident)

    cost = pl.CostEstimate(
        flops=2 * B_eff * (S * L + L * L + L * A),
        transcendentals=0,
        bytes_accessed=4 * (Bp * S + Bp * Ap) + weight_bytes_db // 2,
    )

    out = pl.pallas_call(
        qnetwork_kernel,
        out_shape=jax.ShapeDtypeStruct((Bp, Ap), jnp.float32),
        grid_spec=pltpu.PrefetchScalarGridSpec(
            num_scalar_prefetch=0,
            grid=(Bp // TB,),
            in_specs=[
                pl.BlockSpec((TB, S), lambda i: (i, 0)),   # x: streamed, real width
                pl.BlockSpec((S, Lp), const2),
                pl.BlockSpec((1, Lp), const2),
                pl.BlockSpec((Lp, Lp), const2),
                pl.BlockSpec((1, Lp), const2),
                pl.BlockSpec((Lp, Ap), const2),
                pl.BlockSpec((1, Ap), const2),
            ],
            out_specs=pl.BlockSpec((TB, Ap), lambda i: (i, 0)),
        ),
        compiler_params=pltpu.CompilerParams(
            dimension_semantics=("parallel",),   # batch tiles shard across v7x's 2 TCs
            vmem_limit_bytes=32 * 1024 * 1024,
        ),
        cost_estimate=cost,
    )(xp, w1p, b1p, w2p, b2p, w3p, b3p)

    if trim_output:
        # Separate XLA op; consumers that can mask padded rows / zero action
        # lanes (e.g. before argmax) should pass trim_output=False instead.
        out = out[:B, :A]
    return out


def init_params(key, state_dim, latent_dim, actions_dim):
    """Deterministic synthetic init (PyTorch-Linear-style uniform bounds)."""
    ks = jax.random.split(key, 6)

    def uniform(k, shape, fan_in):
        bound = 1.0 / jnp.sqrt(fan_in)
        return jax.random.uniform(k, shape, jnp.float32, -bound, bound)

    return {
        "w1": uniform(ks[0], (state_dim, latent_dim), state_dim),
        "b1": uniform(ks[1], (1, latent_dim), state_dim),
        "w2": uniform(ks[2], (latent_dim, latent_dim), latent_dim),
        "b2": uniform(ks[3], (1, latent_dim), latent_dim),
        "w3": uniform(ks[4], (latent_dim, actions_dim), latent_dim),
        "b3": uniform(ks[5], (1, actions_dim), latent_dim),
    }


def reference_forward(x, p):
    h = x @ p["w1"] + p["b1"]
    h = jnp.where(h > 0, h, NEG_SLOPE * h)
    h = h @ p["w2"] + p["b2"]
    h = jnp.where(h > 0, h, NEG_SLOPE * h)
    return h @ p["w3"] + p["b3"]


# TODO(synk): the module's Adam optimizer / training step is out of scope; only the
# forward pass is implemented as a kernel.

if __name__ == "__main__":
    state_dim, actions_dim, latent_dim = 16, 8, 32

    key = jax.random.PRNGKey(0)
    kx, kp, kx2 = jax.random.split(key, 3)
    params = init_params(kp, state_dim, latent_dim, actions_dim)

    # Small batch (single 8-row padded tile), typical DQN act() usage.
    x_small = jax.random.normal(kx, (2, state_dim), jnp.float32)
    q_small = jax.block_until_ready(qnetwork_forward(x_small, params))
    q_small_ref = reference_forward(x_small, params)
    assert q_small.shape == (2, actions_dim)
    assert jnp.allclose(q_small, q_small_ref, atol=1e-5, rtol=1e-5)

    # Larger batch: balanced tiling => a single 600-row tile on v5e/v6e,
    # two 304-row tiles on v7x (both TensorCores engaged).
    x_big = jax.random.normal(kx2, (600, state_dim), jnp.float32)
    q_big = jax.block_until_ready(qnetwork_forward(x_big, params))
    q_big_ref = reference_forward(x_big, params)
    assert q_big.shape == (600, actions_dim)
    assert jnp.allclose(q_big, q_big_ref, atol=1e-4, rtol=1e-4)

    # Padded-output path (no trailing HBM slice): padded rows / action lanes are 0.
    q_pad = jax.block_until_ready(qnetwork_forward(x_big, params, trim_output=False))
    assert jnp.allclose(q_pad[:600, :actions_dim], q_big_ref, atol=1e-4, rtol=1e-4)

    print("KERNEL_OK")
</pallas_src>

<mosaic_0001>
module attributes {stable_mosaic.version = 11 : i64} {
  func.func @qnetwork_kernel(%arg0: i32, %arg1: memref<8x16xf32, #tpu.memory_space<vmem>>, %arg2: memref<16x128xf32, #tpu.memory_space<vmem>>, %arg3: memref<1x128xf32, #tpu.memory_space<vmem>>, %arg4: memref<128x128xf32, #tpu.memory_space<vmem>>, %arg5: memref<1x128xf32, #tpu.memory_space<vmem>>, %arg6: memref<128x128xf32, #tpu.memory_space<vmem>>, %arg7: memref<1x128xf32, #tpu.memory_space<vmem>>, %arg8: memref<8x128xf32, #tpu.memory_space<vmem>>) attributes {dimension_semantics = [#tpu.dimension_semantics<parallel>], iteration_bounds = array<i64: 1>, scalar_prefetch = 0 : i64, scratch_operands = 0 : i64, tpu.core_type = #tpu.core_type<tc>, window_params = [{transform_indices = @transform_0, window_bounds = array<i64: 8, 16>}, {pipeline_mode = #tpu.pipeline_mode<synchronous>, transform_indices = @transform_1, window_bounds = array<i64: 16, 128>}, {pipeline_mode = #tpu.pipeline_mode<synchronous>, transform_indices = @transform_2, window_bounds = array<i64: 1, 128>}, {pipeline_mode = #tpu.pipeline_mode<synchronous>, transform_indices = @transform_3, window_bounds = array<i64: 128, 128>}, {pipeline_mode = #tpu.pipeline_mode<synchronous>, transform_indices = @transform_4, window_bounds = array<i64: 1, 128>}, {pipeline_mode = #tpu.pipeline_mode<synchronous>, transform_indices = @transform_5, window_bounds = array<i64: 128, 128>}, {pipeline_mode = #tpu.pipeline_mode<synchronous>, transform_indices = @transform_6, window_bounds = array<i64: 1, 128>}, {transform_indices = @transform_7, window_bounds = array<i64: 8, 128>}]} {
    %c0 = arith.constant 0 : index
    %c0_0 = arith.constant 0 : index
    %0 = vector.load %arg1[%c0, %c0_0] : memref<8x16xf32, #tpu.memory_space<vmem>>, vector<8x16xf32>
    %c0_1 = arith.constant 0 : index
    %c0_2 = arith.constant 0 : index
    %1 = vector.load %arg2[%c0_1, %c0_2] : memref<16x128xf32, #tpu.memory_space<vmem>>, vector<16x128xf32>
    %cst = arith.constant dense<0.000000e+00> : vector<8x128xf32>
    %2 = tpu.matmul %0, %1, %cst {dimension_numbers = #tpu.dot_dimension_numbers<[1], [0], [0], [1], [0, 0, 1, 1], [], []>} : vector<8x16xf32>, vector<16x128xf32>, vector<8x128xf32> -> vector<8x128xf32>
    %c0_3 = arith.constant 0 : index
    %c0_4 = arith.constant 0 : index
    %3 = vector.load %arg3[%c0_3, %c0_4] : memref<1x128xf32, #tpu.memory_space<vmem>>, vector<1x128xf32>
    %4 = vector.broadcast %3 : vector<1x128xf32> to vector<8x128xf32>
    %5 = arith.addf %2, %4 : vector<8x128xf32>
    %cst_5 = arith.constant 0.00999999977 : f32
    %6 = vector.broadcast %cst_5 : f32 to vector<8x128xf32>
    %7 = arith.mulf %6, %5 : vector<8x128xf32>
    %8 = arith.maximumf %5, %7 : vector<8x128xf32>
    %c0_6 = arith.constant 0 : index
    %c0_7 = arith.constant 0 : index
    %9 = vector.load %arg4[%c0_6, %c0_7] : memref<128x128xf32, #tpu.memory_space<vmem>>, vector<128x128xf32>
    %cst_8 = arith.constant dense<0.000000e+00> : vector<8x128xf32>
    %10 = tpu.matmul %8, %9, %cst_8 {dimension_numbers = #tpu.dot_dimension_numbers<[1], [0], [0], [1], [0, 0, 1, 1], [], []>} : vector<8x128xf32>, vector<128x128xf32>, vector<8x128xf32> -> vector<8x128xf32>
    %c0_9 = arith.constant 0 : index
    %c0_10 = arith.constant 0 : index
    %11 = vector.load %arg5[%c0_9, %c0_10] : memref<1x128xf32, #tpu.memory_space<vmem>>, vector<1x128xf32>
    %12 = vector.broadcast %11 : vector<1x128xf32> to vector<8x128xf32>
    %13 = arith.addf %10, %12 : vector<8x128xf32>
    %cst_11 = arith.constant 0.00999999977 : f32
    %14 = vector.broadcast %cst_11 : f32 to vector<8x128xf32>
    %15 = arith.mulf %14, %13 : vector<8x128xf32>
    %16 = arith.maximumf %13, %15 : vector<8x128xf32>
    %c0_12 = arith.constant 0 : index
    %c0_13 = arith.constant 0 : index
    %17 = vector.load %arg6[%c0_12, %c0_13] : memref<128x128xf32, #tpu.memory_space<vmem>>, vector<128x128xf32>
    %cst_14 = arith.constant dense<0.000000e+00> : vector<8x128xf32>
    %18 = tpu.matmul %16, %17, %cst_14 {dimension_numbers = #tpu.dot_dimension_numbers<[1], [0], [0], [1], [0, 0, 1, 1], [], []>} : vector<8x128xf32>, vector<128x128xf32>, vector<8x128xf32> -> vector<8x128xf32>
    %c0_15 = arith.constant 0 : index
    %c0_16 = arith.constant 0 : index
    %19 = vector.load %arg7[%c0_15, %c0_16] : memref<1x128xf32, #tpu.memory_space<vmem>>, vector<1x128xf32>
    %20 = vector.broadcast %19 : vector<1x128xf32> to vector<8x128xf32>
    %21 = arith.addf %18, %20 : vector<8x128xf32>
    %c0_17 = arith.constant 0 : index
    %c0_18 = arith.constant 0 : index
    %22 = vector.load %arg8[%c0_17, %c0_18] : memref<8x128xf32, #tpu.memory_space<vmem>>, vector<8x128xf32>
    tpu.vector_store %arg8[%c0_17, %c0_18], %21 {strides = array<i32>} : memref<8x128xf32, #tpu.memory_space<vmem>>, vector<8x128xf32>,
    return
  }
  func.func @transform_0(%arg0: i32) -> (i32, i32) {
    %c0_i32 = arith.constant 0 : i32
    %c0_i32_0 = arith.constant 0 : i32
    return %arg0, %c0_i32 : i32, i32
  }
  func.func @transform_1(%arg0: i32) -> (i32, i32) {
    %c0_i32 = arith.constant 0 : i32
    %c0_i32_0 = arith.constant 0 : i32
    %c0_i32_1 = arith.constant 0 : i32
    return %c0_i32, %c0_i32_0 : i32, i32
  }
  func.func @transform_2(%arg0: i32) -> (i32, i32) {
    %c0_i32 = arith.constant 0 : i32
    %c0_i32_0 = arith.constant 0 : i32
    %c0_i32_1 = arith.constant 0 : i32
    return %c0_i32, %c0_i32_0 : i32, i32
  }
  func.func @transform_3(%arg0: i32) -> (i32, i32) {
    %c0_i32 = arith.constant 0 : i32
    %c0_i32_0 = arith.constant 0 : i32
    %c0_i32_1 = arith.constant 0 : i32
    return %c0_i32, %c0_i32_0 : i32, i32
  }
  func.func @transform_4(%arg0: i32) -> (i32, i32) {
    %c0_i32 = arith.constant 0 : i32
    %c0_i32_0 = arith.constant 0 : i32
    %c0_i32_1 = arith.constant 0 : i32
    return %c0_i32, %c0_i32_0 : i32, i32
  }
  func.func @transform_5(%arg0: i32) -> (i32, i32) {
    %c0_i32 = arith.constant 0 : i32
    %c0_i32_0 = arith.constant 0 : i32
    %c0_i32_1 = arith.constant 0 : i32
    return %c0_i32, %c0_i32_0 : i32, i32
  }
  func.func @transform_6(%arg0: i32) -> (i32, i32) {
    %c0_i32 = arith.constant 0 : i32
    %c0_i32_0 = arith.constant 0 : i32
    %c0_i32_1 = arith.constant 0 : i32
    return %c0_i32, %c0_i32_0 : i32, i32
  }
  func.func @transform_7(%arg0: i32) -> (i32, i32) {
    %c0_i32 = arith.constant 0 : i32
    %c0_i32_0 = arith.constant 0 : i32
    return %arg0, %c0_i32 : i32, i32
  }
}

</mosaic_0001>

<llo_original>
// kernel: tpu_custom_call.1
$region0: #{tpu_custom_call.1}
  #allocation0 [shape = 'u32[]', space=smem, size = 0x4, offset = 0x4, fixed_abs, tag = 'smem constant byte address 0x4 - core index']
  #allocation1 [shape = 'u32[144,128]{1,0:T(1,128)}', space=vmem, size = 0x12000, scoped, tag = 'internal scratch']
  %s0 = inlined_call_operand.hbm [shape: f32[8,16], index: 0, kind: input, shape index: {}]
  %s1 = inlined_call_operand.hbm [shape: f32[16,128], index: 1, kind: input, shape index: {}]
  %s2 = inlined_call_operand.vmem [shape: f32[1,128], index: 2, kind: input, shape index: {}]
  %s3 = inlined_call_operand.hbm [shape: f32[128,128], index: 3, kind: input, shape index: {}]
  %s4 = inlined_call_operand.vmem [shape: f32[1,128], index: 4, kind: input, shape index: {}]
  %s5 = inlined_call_operand.hbm [shape: f32[128,128], index: 5, kind: input, shape index: {}]
  %s6 = inlined_call_operand.vmem [shape: f32[1,128], index: 6, kind: input, shape index: {}]
  %s7 = inlined_call_operand.hbm [shape: f32[8,128], index: 7, kind: output, shape index: {}]
  %s8 = sld [smem:[#allocation0]]
  $region54: #{tpu_custom_call.1} parent=0
    _
  %s10 = ssub.s32 1, %s8
  %s11 = scalar_select 0, %s10, %s8
  $region1: #{tpu_custom_call.1} parent=0
    #allocation2 [shape = 'u8[4096]{0}', space=vmem, size = 0x1000, scoped, tag = 'input window, operand 0, single buffered']
    #allocation3 [shape = 's32[1]{0}', space=sflag, size = 0x4, scoped, tag = 'scoped memory for tpu_custom_call.1']
    #allocation4 [shape = 's32[1]{0}', space=sflag, size = 0x4, scoped, tag = 'scoped memory for tpu_custom_call.1']
    #allocation5 [shape = 'u8[8192]{0}', space=vmem, size = 0x2000, scoped, tag = 'input window, operand 1, single buffered']
    #allocation6 [shape = 's32[1]{0}', space=sflag, size = 0x4, scoped, tag = 'scoped memory for tpu_custom_call.1']
    #allocation7 [shape = 'u8[65536]{0}', space=vmem, size = 0x10000, scoped, tag = 'input window, operand 3, single buffered']
    #allocation8 [shape = 'u8[65536]{0}', space=vmem, size = 0x10000, scoped, tag = 'input window, operand 5, single buffered']
    #allocation9 [shape = 's32[1]{0}', space=sflag, size = 0x4, scoped, tag = 'scoped memory for tpu_custom_call.1']
    #allocation10 [shape = 'u8[4096]{0}', space=vmem, size = 0x1000, scoped, tag = 'output window, operand 0, single buffered']
    %12 = vsyncpa [#allocation3], 0
    %13 = vsyncpa [#allocation6], 0
    %14 = vsyncpa [#allocation9], 0
    %15 = vsyncpa [#allocation4], 0
    // Predicated region
    $region2: #{tpu_custom_call.1} parent=1 // pred_check
      _
    $region3: #{tpu_custom_call.1} parent=1 // pred_check_branch
      %17 = sbr.rel (0) target = $region5
    $region4: #{tpu_custom_call.1} parent=1 // pred_region
      %s19 = ssub.s32 128, 128
      %20 = vsyncadd [#allocation3], %s19
      %s22 = sshll.u32 [#allocation2], 4
      %s23 = int_to_ptr.vmem [resolvable:$true] %s22
      %25 = dma.hbm_to_vmem [thread:$0]  %s0, 128, %s23, [#allocation3]
    $region5: #{tpu_custom_call.1} parent=1 // pred_fallthru
      _
    // Predicated region
    $region6: #{tpu_custom_call.1} parent=1 // pred_check
      _
    $region7: #{tpu_custom_call.1} parent=1 // pred_check_branch
      %27 = sbr.rel (0) target = $region9
    $region8: #{tpu_custom_call.1} parent=1 // pred_region
      %s29 = ssub.s32 256, 256
      %30 = vsyncadd [#allocation6], %s29
      %s31 = sshll.u32 [#allocation5], 4
      %s32 = int_to_ptr.vmem [resolvable:$true] %s31
      %37 = dma.hbm_to_vmem [thread:$0]  %s1, 256, %s32, [#allocation6], 128, 128, 8
    $region9: #{tpu_custom_call.1} parent=1 // pred_fallthru
      _
    // Predicated region
    $region10: #{tpu_custom_call.1} parent=1 // pred_check
      _
    $region11: #{tpu_custom_call.1} parent=1 // pred_check_branch
      %39 = sbr.rel (0) target = $region13
    $region12: #{tpu_custom_call.1} parent=1 // pred_region
      _
    $region13: #{tpu_custom_call.1} parent=1 // pred_fallthru
      _
    // Predicated region
    $region14: #{tpu_custom_call.1} parent=1 // pred_check
      _
    $region15: #{tpu_custom_call.1} parent=1 // pred_check_branch
      %41 = sbr.rel (0) target = $region17
    $region16: #{tpu_custom_call.1} parent=1 // pred_region
      %s43 = ssub.s32 2048, 2048
      %44 = vsyncadd [#allocation6], %s43
      %s45 = sshll.u32 [#allocation7], 4
      %s46 = int_to_ptr.vmem [resolvable:$true] %s45
      %51 = dma.hbm_to_vmem [thread:$0]  %s3, 2048, %s46, [#allocation6], 128, 128, 8
    $region17: #{tpu_custom_call.1} parent=1 // pred_fallthru
      _
    // Predicated region
    $region18: #{tpu_custom_call.1} parent=1 // pred_check
      _
    $region19: #{tpu_custom_call.1} parent=1 // pred_check_branch
      %53 = sbr.rel (0) target = $region21
    $region20: #{tpu_custom_call.1} parent=1 // pred_region
      _
    $region21: #{tpu_custom_call.1} parent=1 // pred_fallthru
      _
    // Predicated region
    $region22: #{tpu_custom_call.1} parent=1 // pred_check
      _
    $region23: #{tpu_custom_call.1} parent=1 // pred_check_branch
      %55 = sbr.rel (0) target = $region25
    $region24: #{tpu_custom_call.1} parent=1 // pred_region
      %s57 = ssub.s32 2048, 2048
      %58 = vsyncadd [#allocation9], %s57
      %s59 = sshll.u32 [#allocation8], 4
      %s60 = int_to_ptr.vmem [resolvable:$true] %s59
      %65 = dma.hbm_to_vmem [thread:$0]  %s5, 2048, %s60, [#allocation9], 128, 128, 8
    $region25: #{tpu_custom_call.1} parent=1 // pred_fallthru
      _
    // Predicated region
    $region26: #{tpu_custom_call.1} parent=1 // pred_check
      _
    $region27: #{tpu_custom_call.1} parent=1 // pred_check_branch
      %67 = sbr.rel (0) target = $region29
    $region28: #{tpu_custom_call.1} parent=1 // pred_region
      _
    $region29: #{tpu_custom_call.1} parent=1 // pred_fallthru
      _
    // Predicated region
    $region30: #{tpu_custom_call.1} parent=1 // pred_check
      _
    $region31: #{tpu_custom_call.1} parent=1 // pred_check_branch
      %69 = sbr.rel (0) target = $region33
    $region32: #{tpu_custom_call.1} parent=1 // pred_region
      %70 = dma.done [#allocation3], 128
    $region33: #{tpu_custom_call.1} parent=1 // pred_fallthru
      _
    // Predicated region
    $region34: #{tpu_custom_call.1} parent=1 // pred_check
      _
    $region35: #{tpu_custom_call.1} parent=1 // pred_check_branch
      %72 = sbr.rel (0) target = $region37
    $region36: #{tpu_custom_call.1} parent=1 // pred_region
      %73 = dma.done [#allocation6], 256
    $region37: #{tpu_custom_call.1} parent=1 // pred_fallthru
      _
    // Predicated region
    $region38: #{tpu_custom_call.1} parent=1 // pred_check
      _
    $region39: #{tpu_custom_call.1} parent=1 // pred_check_branch
      %75 = sbr.rel (0) target = $region41
    $region40: #{tpu_custom_call.1} parent=1 // pred_region
      %76 = dma.done [#allocation6], 2048
    $region41: #{tpu_custom_call.1} parent=1 // pred_fallthru
      _
    // Predicated region
    $region42: #{tpu_custom_call.1} parent=1 // pred_check
      _
    $region43: #{tpu_custom_call.1} parent=1 // pred_check_branch
      %78 = sbr.rel (0) target = $region45
    $region44: #{tpu_custom_call.1} parent=1 // pred_region
      %79 = dma.done [#allocation9], 2048
    $region45: #{tpu_custom_call.1} parent=1 // pred_fallthru
      _
    %v80 = vld [vmem:[#allocation2] sm:$0xff]
    %v81 = vld [vmem:[#allocation5] sm:$0xff]
    %v82 = vld [vmem:[#allocation5 + $0x8] sm:$0xff]
    %v83 = vld [vmem:[%s2] sm:$0x1]
    %v85 = vlaneseq
    %v86 = vshrl.u32 %v85, 7
    %v87 = vsub.s32 0, %v86
    %v88 = vrot.slane %v83, %v87
    %vm90 = vcmask 130048
    %v92 = vsel %vm90, %v80, 0
    %94 = vmatprep.subr.mxu0 0.0
    %95 = vmatpush1.msra.mxu0 %v81
    %96 = vmatprep.subr.mxu0 0.0
    %97 = vmatpush1.msra.mxu0 %v82
    %98 = vmatprep.subr.mxu0 0.0
    %99 = vmatpush1.msra.mxu0 0.0
    %100 = vmatprep.subr.mxu0 0.0
    %101 = vmatpush1.msra.mxu0 0.0
    %102 = vmatprep.subr.mxu0 0.0
    %103 = vmatpush1.msra.mxu0 0.0
    %104 = vmatprep.subr.mxu0 0.0
    %105 = vmatpush1.msra.mxu0 0.0
    %106 = vmatprep.subr.mxu0 0.0
    %107 = vmatpush1.msra.mxu0 0.0
    %108 = vmatprep.subr.mxu0 0.0
    %109 = vmatpush1.msra.mxu0 0.0
    %110 = vmatprep.subr.mxu0 0.0
    %111 = vmatpush1.msra.mxu0 0.0
    %112 = vmatprep.subr.mxu0 0.0
    %113 = vmatpush1.msra.mxu0 0.0
    %114 = vmatprep.subr.mxu0 0.0
    %115 = vmatpush1.msra.mxu0 0.0
    %116 = vmatprep.subr.mxu0 0.0
    %117 = vmatpush1.msra.mxu0 0.0
    %118 = vmatprep.subr.mxu0 0.0
    %119 = vmatpush1.msra.mxu0 0.0
    %120 = vmatprep.subr.mxu0 0.0
    %121 = vmatpush1.msra.mxu0 0.0
    %122 = vmatprep.subr.mxu0 0.0
    %123 = vmatpush1.msra.mxu0 0.0
    %124 = vmatprep.subr.mxu0 0.0
    %125 = vmatpush1.msra.mxu0 0.0
    %126 = vmatprep.subr.mxu0 0.0
    %127 = vmatpush1.msra.mxu0 0.0
    %128 = vmatprep.subr.mxu0 0.0
    %129 = vmatpush1.msra.mxu0 0.0
    %130 = vmatprep.subr.mxu0 0.0
    %131 = vmatpush1.msra.mxu0 0.0
    %132 = vmatprep.subr.mxu0 0.0
    %133 = vmatpush1.msra.mxu0 0.0
    %134 = vmatprep.subr.mxu0 0.0
    %135 = vmatpush1.msra.mxu0 0.0
    %136 = vmatprep.subr.mxu0 0.0
    %137 = vmatpush1.msra.mxu0 0.0
    %138 = vmatprep.subr.mxu0 0.0
    %139 = vmatpush1.msra.mxu0 0.0
    %140 = vmatprep.subr.mxu0 0.0
    %141 = vmatpush1.msra.mxu0 0.0
    %142 = vmatprep.subr.mxu0 0.0
    %143 = vmatpush1.msra.mxu0 0.0
    %144 = vmatprep.subr.mxu0 0.0
    %145 = vmatpush1.msra.mxu0 0.0
    %146 = vmatprep.subr.mxu0 0.0
    %147 = vmatpush1.msra.mxu0 0.0
    %148 = vmatprep.subr.mxu0 0.0
    %149 = vmatpush1.msra.mxu0 0.0
    %150 = vmatprep.subr.mxu0 0.0
    %151 = vmatpush1.msra.mxu0 0.0
    %152 = vmatprep.subr.mxu0 0.0
    %153 = vmatpush1.msra.mxu0 0.0
    %154 = vmatprep.subr.mxu0 0.0
    %155 = vmatpush1.msra.mxu0 0.0
    %156 = vmatprep.subr.mxu0 0.0
    %157 = vmatpush1.msra.mxu0 0.0
    %158 = vmatprep.mubr.f32.mxu0 0.0
    %159 = vmatmul.mubr.f32.gmra.mrb[0].mxu0 %v92
    %v160 = vpop.f32.mrb[0].mxu0
    %v161 = vadd.f32 %v88, %v160
    %v162 = vpop.f32.mrb[0].mxu0
    %163 = vdwg.mxu0
    %v164 = vmul.f32 %v161, 0.01
    %v165 = vmax.f32 %v161, %v164
    %v166 = vld [vmem:[#allocation7] sm:$0xff]
    %v167 = vld [vmem:[#allocation7 + $0x8] sm:$0xff]
    %v168 = vld [vmem:[#allocation7 + $0x10] sm:$0xff]
    %v169 = vld [vmem:[#allocation7 + $0x18] sm:$0xff]
    %v170 = vld [vmem:[#allocation7 + $0x20] sm:$0xff]
    %v171 = vld [vmem:[#allocation7 + $0x28] sm:$0xff]
    %v172 = vld [vmem:[#allocation7 + $0x30] sm:$0xff]
    %v173 = vld [vmem:[#allocation7 + $0x38] sm:$0xff]
    %v174 = vld [vmem:[#allocation7 + $0x40] sm:$0xff]
    %v175 = vld [vmem:[#allocation7 + $0x48] sm:$0xff]
    %v176 = vld [vmem:[#allocation7 + $0x50] sm:$0xff]
    %v177 = vld [vmem:[#allocation7 + $0x58] sm:$0xff]
    %v178 = vld [vmem:[#allocation7 + $0x60] sm:$0xff]
    %v179 = vld [vmem:[#allocation7 + $0x68] sm:$0xff]
    %v180 = vld [vmem:[#allocation7 + $0x70] sm:$0xff]
    %v181 = vld [vmem:[#allocation7 + $0x78] sm:$0xff]
    %v182 = vld [vmem:[%s4] sm:$0x1]
    %v184 = vlaneseq
    %v185 = vshrl.u32 %v184, 7
    %v186 = vsub.s32 0, %v185
    %v187 = vrot.slane %v182, %v186
    %189 = vmatprep.subr.mxu0 0.0
    %190 = vmatpush1.msra.mxu0 %v166
    %191 = vmatprep.subr.mxu0 0.0
    %192 = vmatpush1.msra.mxu0 %v167
    %193 = vmatprep.subr.mxu0 0.0
    %194 = vmatpush1.msra.mxu0 %v168
    %195 = vmatprep.subr.mxu0 0.0
    %196 = vmatpush1.msra.mxu0 %v169
    %197 = vmatprep.subr.mxu0 0.0
    %198 = vmatpush1.msra.mxu0 %v170
    %199 = vmatprep.subr.mxu0 0.0
    %200 = vmatpush1.msra.mxu0 %v171
    %201 = vmatprep.subr.mxu0 0.0
    %202 = vmatpush1.msra.mxu0 %v172
    %203 = vmatprep.subr.mxu0 0.0
    %204 = vmatpush1.msra.mxu0 %v173
    %205 = vmatprep.subr.mxu0 0.0
    %206 = vmatpush1.msra.mxu0 %v174
    %207 = vmatprep.subr.mxu0 0.0
    %208 = vmatpush1.msra.mxu0 %v175
    %209 = vmatprep.subr.mxu0 0.0
    %210 = vmatpush1.msra.mxu0 %v176
    %211 = vmatprep.subr.mxu0 0.0
    %212 = vmatpush1.msra.mxu0 %v177
    %213 = vmatprep.subr.mxu0 0.0
    %214 = vmatpush1.msra.mxu0 %v178
    %215 = vmatprep.subr.mxu0 0.0
    %216 = vmatpush1.msra.mxu0 %v179
    %217 = vmatprep.subr.mxu0 0.0
    %218 = vmatpush1.msra.mxu0 %v180
    %219 = vmatprep.subr.mxu0 0.0
    %220 = vmatpush1.msra.mxu0 %v181
    %221 = vmatprep.subr.mxu0 0.0
    %222 = vmatpush1.msra.mxu0 0.0
    %223 = vmatprep.subr.mxu0 0.0
    %224 = vmatpush1.msra.mxu0 0.0
    %225 = vmatprep.subr.mxu0 0.0
    %226 = vmatpush1.msra.mxu0 0.0
    %227 = vmatprep.subr.mxu0 0.0
    %228 = vmatpush1.msra.mxu0 0.0
    %229 = vmatprep.subr.mxu0 0.0
    %230 = vmatpush1.msra.mxu0 0.0
    %231 = vmatprep.subr.mxu0 0.0
    %232 = vmatpush1.msra.mxu0 0.0
    %233 = vmatprep.subr.mxu0 0.0
    %234 = vmatpush1.msra.mxu0 0.0
    %235 = vmatprep.subr.mxu0 0.0
    %236 = vmatpush1.msra.mxu0 0.0
    %237 = vmatprep.subr.mxu0 0.0
    %238 = vmatpush1.msra.mxu0 0.0
    %239 = vmatprep.subr.mxu0 0.0
    %240 = vmatpush1.msra.mxu0 0.0
    %241 = vmatprep.subr.mxu0 0.0
    %242 = vmatpush1.msra.mxu0 0.0
    %243 = vmatprep.subr.mxu0 0.0
    %244 = vmatpush1.msra.mxu0 0.0
    %245 = vmatprep.subr.mxu0 0.0
    %246 = vmatpush1.msra.mxu0 0.0
    %247 = vmatprep.subr.mxu0 0.0
    %248 = vmatpush1.msra.mxu0 0.0
    %249 = vmatprep.subr.mxu0 0.0
    %250 = vmatpush1.msra.mxu0 0.0
    %251 = vmatprep.subr.mxu0 0.0
    %252 = vmatpush1.msra.mxu0 0.0
    %253 = vmatprep.mubr.f32.mxu0 0.0
    %254 = vmatmul.mubr.f32.gmra.mrb[0].mxu0 %v165
    %v255 = vpop.f32.mrb[0].mxu0
    %v256 = vadd.f32 %v187, %v255
    %v257 = vpop.f32.mrb[0].mxu0
    %258 = vdwg.mxu0
    %v259 = vmul.f32 %v256, 0.01
    %v260 = vmax.f32 %v256, %v259
    %v261 = vld [vmem:[#allocation8] sm:$0xff]
    %v262 = vld [vmem:[#allocation8 + $0x8] sm:$0xff]
    %v263 = vld [vmem:[#allocation8 + $0x10] sm:$0xff]
    %v264 = vld [vmem:[#allocation8 + $0x18] sm:$0xff]
    %v265 = vld [vmem:[#allocation8 + $0x20] sm:$0xff]
    %v266 = vld [vmem:[#allocation8 + $0x28] sm:$0xff]
    %v267 = vld [vmem:[#allocation8 + $0x30] sm:$0xff]
    %v268 = vld [vmem:[#allocation8 + $0x38] sm:$0xff]
    %v269 = vld [vmem:[#allocation8 + $0x40] sm:$0xff]
    %v270 = vld [vmem:[#allocation8 + $0x48] sm:$0xff]
    %v271 = vld [vmem:[#allocation8 + $0x50] sm:$0xff]
    %v272 = vld [vmem:[#allocation8 + $0x58] sm:$0xff]
    %v273 = vld [vmem:[#allocation8 + $0x60] sm:$0xff]
    %v274 = vld [vmem:[#allocation8 + $0x68] sm:$0xff]
    %v275 = vld [vmem:[#allocation8 + $0x70] sm:$0xff]
    %v276 = vld [vmem:[#allocation8 + $0x78] sm:$0xff]
    %v277 = vld [vmem:[%s6] sm:$0x1]
    %v279 = vlaneseq
    %v280 = vshrl.u32 %v279, 7
    %v281 = vsub.s32 0, %v280
    %v282 = vrot.slane %v277, %v281
    %284 = vmatprep.subr.mxu0 0.0
    %285 = vmatpush1.msra.mxu0 %v261
    %286 = vmatprep.subr.mxu0 0.0
    %287 = vmatpush1.msra.mxu0 %v262
    %288 = vmatprep.subr.mxu0 0.0
    %289 = vmatpush1.msra.mxu0 %v263
    %290 = vmatprep.subr.mxu0 0.0
    %291 = vmatpush1.msra.mxu0 %v264
    %292 = vmatprep.subr.mxu0 0.0
    %293 = vmatpush1.msra.mxu0 %v265
    %294 = vmatprep.subr.mxu0 0.0
    %295 = vmatpush1.msra.mxu0 %v266
    %296 = vmatprep.subr.mxu0 0.0
    %297 = vmatpush1.msra.mxu0 %v267
    %298 = vmatprep.subr.mxu0 0.0
    %299 = vmatpush1.msra.mxu0 %v268
    %300 = vmatprep.subr.mxu0 0.0
    %301 = vmatpush1.msra.mxu0 %v269
    %302 = vmatprep.subr.mxu0 0.0
    %303 = vmatpush1.msra.mxu0 %v270
    %304 = vmatprep.subr.mxu0 0.0
    %305 = vmatpush1.msra.mxu0 %v271
    %306 = vmatprep.subr.mxu0 0.0
    %307 = vmatpush1.msra.mxu0 %v272
    %308 = vmatprep.subr.mxu0 0.0
    %309 = vmatpush1.msra.mxu0 %v273
    %310 = vmatprep.subr.mxu0 0.0
    %311 = vmatpush1.msra.mxu0 %v274
    %312 = vmatprep.subr.mxu0 0.0
    %313 = vmatpush1.msra.mxu0 %v275
    %314 = vmatprep.subr.mxu0 0.0
    %315 = vmatpush1.msra.mxu0 %v276
    %316 = vmatprep.subr.mxu0 0.0
    %317 = vmatpush1.msra.mxu0 0.0
    %318 = vmatprep.subr.mxu0 0.0
    %319 = vmatpush1.msra.mxu0 0.0
    %320 = vmatprep.subr.mxu0 0.0
    %321 = vmatpush1.msra.mxu0 0.0
    %322 = vmatprep.subr.mxu0 0.0
    %323 = vmatpush1.msra.mxu0 0.0
    %324 = vmatprep.subr.mxu0 0.0
    %325 = vmatpush1.msra.mxu0 0.0
    %326 = vmatprep.subr.mxu0 0.0
    %327 = vmatpush1.msra.mxu0 0.0
    %328 = vmatprep.subr.mxu0 0.0
    %329 = vmatpush1.msra.mxu0 0.0
    %330 = vmatprep.subr.mxu0 0.0
    %331 = vmatpush1.msra.mxu0 0.0
    %332 = vmatprep.subr.mxu0 0.0
    %333 = vmatpush1.msra.mxu0 0.0
    %334 = vmatprep.subr.mxu0 0.0
    %335 = vmatpush1.msra.mxu0 0.0
    %336 = vmatprep.subr.mxu0 0.0
    %337 = vmatpush1.msra.mxu0 0.0
    %338 = vmatprep.subr.mxu0 0.0
    %339 = vmatpush1.msra.mxu0 0.0
    %340 = vmatprep.subr.mxu0 0.0
    %341 = vmatpush1.msra.mxu0 0.0
    %342 = vmatprep.subr.mxu0 0.0
    %343 = vmatpush1.msra.mxu0 0.0
    %344 = vmatprep.subr.mxu0 0.0
    %345 = vmatpush1.msra.mxu0 0.0
    %346 = vmatprep.subr.mxu0 0.0
    %347 = vmatpush1.msra.mxu0 0.0
    %348 = vmatprep.mubr.f32.mxu0 0.0
    %349 = vmatmul.mubr.f32.gmra.mrb[0].mxu0 %v260
    %v350 = vpop.f32.mrb[0].mxu0
    %v351 = vadd.f32 %v282, %v350
    %v352 = vpop.f32.mrb[0].mxu0
    %353 = vdwg.mxu0
    %354 = vst [vmem:[#allocation10] sm:$0xff] %v351
    // Predicated region
    $region46: #{tpu_custom_call.1} parent=1 // pred_check
      _
    $region47: #{tpu_custom_call.1} parent=1 // pred_check_branch
      %356 = sbr.rel (0) target = $region49
    $region48: #{tpu_custom_call.1} parent=1 // pred_region
      %s358 = ssub.s32 128, 128
      %359 = vsyncadd [#allocation4], %s358
      %s361 = sshll.u32 [#allocation10], 4
      %s362 = int_to_ptr.vmem [resolvable:$true] %s361
      %364 = dma.vmem_to_hbm [thread:$0]  %s362, 128, %s7, [#allocation4]
    $region49: #{tpu_custom_call.1} parent=1 // pred_fallthru
      _
    // Predicated region
    $region50: #{tpu_custom_call.1} parent=1 // pred_check
      _
    $region51: #{tpu_custom_call.1} parent=1 // pred_check_branch
      %366 = sbr.rel (0) target = $region53
    $region52: #{tpu_custom_call.1} parent=1 // pred_region
      %367 = dma.done [#allocation4], 128
    $region53: #{tpu_custom_call.1} parent=1 // pred_fallthru
      _
    %368 = vsyncpa [#allocation3], 1
    %369 = vsyncpa [#allocation6], 1
    %370 = vsyncpa [#allocation9], 1
    %371 = vsyncpa [#allocation4], 1

</llo_original>
